<compile_context>
chip_gen: v6e
topology: v6e:2x2x1
jax: 0.10.0
libtpu: 0.0.40
codegen_flags: <defaults>
</compile_context>

<pallas_src>
import functools

import jax
import jax.numpy as jnp
from jax.experimental import pallas as pl
from jax.experimental.pallas import tpu as pltpu

_LANE = 128      # lane width: output features padded to a multiple of this
_SUBLANE = 8     # sublane count: batch padded to a multiple of this
_MAX_TM = 256    # max batch-tile rows per grid step (VMEM-friendly on v7x too)
_SMALL_K = 8     # contraction dims <= this use the VPU FMA path (skip MXU)


def _round_up(x, m):
    return ((x + m - 1) // m) * m


def _linear_kernel(x_ref, w_ref, b_ref, o_ref):
    """One batch tile: o = x @ w + b.

    x_ref: (tm, d_in)    w_ref: (d_in, d_out_p)
    b_ref: (1, d_out_p)  o_ref: (tm, d_out_p)
    """
    d_in = x_ref.shape[1]  # static
    x = x_ref[...].astype(jnp.float32)
    w = w_ref[...].astype(jnp.float32)
    if d_in <= _SMALL_K:
        # VPU broadcast-FMA path: K is tiny, skip the MXU entirely.
        acc = x[:, 0:1] * w[0:1, :]
        for k in range(1, d_in):
            acc = acc + x[:, k:k + 1] * w[k:k + 1, :]
    else:
        # MXU path for non-trivial contraction dims.
        # TODO(synk): for very large K/N also tile the K axis with a VMEM
        # accumulator (P3 pattern); not needed at these shapes.
        acc = jnp.dot(x, w, preferred_element_type=jnp.float32)
    o_ref[...] = (acc + b_ref[...].astype(jnp.float32)).astype(o_ref.dtype)


def prepare_linear_params(weight, bias, lane=_LANE):
    """One-time parameter prep (outside the hot path): transpose + lane-pad.

    weight: (feat_dim, input_dim)   (PyTorch nn.Linear convention)
    bias:   (feat_dim,)
    returns w_t: (input_dim, feat_dim_padded), b2d: (1, feat_dim_padded)
    """
    d_out, d_in = weight.shape
    d_out_p = _round_up(max(d_out, lane), lane)
    w_t = jnp.zeros((d_in, d_out_p), weight.dtype).at[:, :d_out].set(weight.T)
    b2d = jnp.zeros((1, d_out_p), bias.dtype).at[0, :d_out].set(bias)
    return w_t, b2d


@functools.partial(jax.jit, static_argnames=("d_out",))
def linear_encoder_forward(x, w_t, b2d, *, d_out):
    """y = x @ W.T + b    (x: (B, input_dim) -> (B, d_out))."""
    B, d_in = x.shape
    d_out_p = w_t.shape[1]

    # Pad batch to a multiple of 8 sublanes and to a whole number of tiles.
    Bp = _round_up(max(B, _SUBLANE), _SUBLANE)
    tm = Bp if Bp <= _MAX_TM else _MAX_TM
    Bp = _round_up(Bp, tm)
    if Bp != B:
        x = jnp.pad(x, ((0, Bp - B), (0, 0)))

    grid = (Bp // tm,)

    cost = pl.CostEstimate(
        flops=2 * Bp * d_in * d_out_p,
        transcendentals=0,
        bytes_accessed=4 * (Bp * d_in + d_in * d_out_p + d_out_p
                            + Bp * d_out_p),
    )

    out = pl.pallas_call(
        _linear_kernel,
        out_shape=jax.ShapeDtypeStruct((Bp, d_out_p), x.dtype),
        grid_spec=pltpu.PrefetchScalarGridSpec(
            num_scalar_prefetch=0,
            grid=grid,
            in_specs=[
                pl.BlockSpec((tm, d_in), lambda i: (i, 0)),
                pl.BlockSpec((d_in, d_out_p), lambda i: (0, 0)),
                pl.BlockSpec((1, d_out_p), lambda i: (0, 0)),
            ],
            out_specs=pl.BlockSpec((tm, d_out_p), lambda i: (i, 0)),
        ),
        compiler_params=pltpu.CompilerParams(
            # Batch tiles are independent -> shard across v7x's 2 TCs.
            dimension_semantics=("parallel",),
        ),
        cost_estimate=cost,
    )(x, w_t, b2d)

    # Drop batch/feature padding.
    return out[:B, :d_out]


if __name__ == "__main__":
    input_dim = 2
    feat_dim = 64
    batch = 8

    key = jax.random.PRNGKey(0)
    kx, kw, kb = jax.random.split(key, 3)

    # Deterministic parameter init (shapes per nn.Linear(input_dim, feat_dim)).
    bound = 1.0 / (input_dim ** 0.5)
    weight = jax.random.uniform(kw, (feat_dim, input_dim), jnp.float32,
                                minval=-bound, maxval=bound)
    bias = jax.random.uniform(kb, (feat_dim,), jnp.float32,
                              minval=-bound, maxval=bound)

    x = jax.random.normal(kx, (batch, input_dim), jnp.float32)

    # One-time parameter preparation (outside the hot path).
    w_t, b2d = prepare_linear_params(weight, bias)

    out = linear_encoder_forward(x, w_t, b2d, d_out=feat_dim)
    out = jax.block_until_ready(out)

    # Reference check against plain JAX (same math as torch nn.Linear).
    ref = x @ weight.T + bias
    assert out.shape == (batch, feat_dim)
    assert jnp.allclose(out, ref, atol=1e-5, rtol=1e-5)

    print("KERNEL_OK")
</pallas_src>

<mosaic_0001>
module attributes {stable_mosaic.version = 11 : i64} {
  func.func @_linear_kernel(%arg0: i32, %arg1: memref<8x2xf32, #tpu.memory_space<vmem>>, %arg2: memref<2x128xf32, #tpu.memory_space<vmem>>, %arg3: memref<1x128xf32, #tpu.memory_space<vmem>>, %arg4: memref<8x128xf32, #tpu.memory_space<vmem>>) attributes {dimension_semantics = [#tpu.dimension_semantics<parallel>], iteration_bounds = array<i64: 1>, scalar_prefetch = 0 : i64, scratch_operands = 0 : i64, tpu.core_type = #tpu.core_type<tc>, window_params = [{transform_indices = @transform_0, window_bounds = array<i64: 8, 2>}, {pipeline_mode = #tpu.pipeline_mode<synchronous>, transform_indices = @transform_1, window_bounds = array<i64: 2, 128>}, {pipeline_mode = #tpu.pipeline_mode<synchronous>, transform_indices = @transform_2, window_bounds = array<i64: 1, 128>}, {transform_indices = @transform_3, window_bounds = array<i64: 8, 128>}]} {
    %c0 = arith.constant 0 : index
    %c0_0 = arith.constant 0 : index
    %0 = vector.load %arg1[%c0, %c0_0] : memref<8x2xf32, #tpu.memory_space<vmem>>, vector<8x2xf32>
    %c0_1 = arith.constant 0 : index
    %c0_2 = arith.constant 0 : index
    %1 = vector.load %arg2[%c0_1, %c0_2] : memref<2x128xf32, #tpu.memory_space<vmem>>, vector<2x128xf32>
    %2 = vector.extract_strided_slice %0 {offsets = [0, 0], sizes = [8, 1], strides = [1, 1]} : vector<8x2xf32> to vector<8x1xf32>
    %3 = vector.extract_strided_slice %1 {offsets = [0, 0], sizes = [1, 128], strides = [1, 1]} : vector<2x128xf32> to vector<1x128xf32>
    %4 = vector.broadcast %2 : vector<8x1xf32> to vector<8x128xf32>
    %5 = vector.broadcast %3 : vector<1x128xf32> to vector<8x128xf32>
    %6 = arith.mulf %4, %5 : vector<8x128xf32>
    %7 = vector.extract_strided_slice %0 {offsets = [0, 1], sizes = [8, 1], strides = [1, 1]} : vector<8x2xf32> to vector<8x1xf32>
    %8 = vector.extract_strided_slice %1 {offsets = [1, 0], sizes = [1, 128], strides = [1, 1]} : vector<2x128xf32> to vector<1x128xf32>
    %9 = vector.broadcast %7 : vector<8x1xf32> to vector<8x128xf32>
    %10 = vector.broadcast %8 : vector<1x128xf32> to vector<8x128xf32>
    %11 = arith.mulf %9, %10 : vector<8x128xf32>
    %12 = arith.addf %6, %11 : vector<8x128xf32>
    %c0_3 = arith.constant 0 : index
    %c0_4 = arith.constant 0 : index
    %13 = vector.load %arg3[%c0_3, %c0_4] : memref<1x128xf32, #tpu.memory_space<vmem>>, vector<1x128xf32>
    %14 = vector.broadcast %13 : vector<1x128xf32> to vector<8x128xf32>
    %15 = arith.addf %12, %14 : vector<8x128xf32>
    %c0_5 = arith.constant 0 : index
    %c0_6 = arith.constant 0 : index
    %16 = vector.load %arg4[%c0_5, %c0_6] : memref<8x128xf32, #tpu.memory_space<vmem>>, vector<8x128xf32>
    tpu.vector_store %arg4[%c0_5, %c0_6], %15 {strides = array<i32>} : memref<8x128xf32, #tpu.memory_space<vmem>>, vector<8x128xf32>,
    return
  }
  func.func @transform_0(%arg0: i32) -> (i32, i32) {
    %c0_i32 = arith.constant 0 : i32
    %c0_i32_0 = arith.constant 0 : i32
    return %arg0, %c0_i32 : i32, i32
  }
  func.func @transform_1(%arg0: i32) -> (i32, i32) {
    %c0_i32 = arith.constant 0 : i32
    %c0_i32_0 = arith.constant 0 : i32
    %c0_i32_1 = arith.constant 0 : i32
    return %c0_i32, %c0_i32_0 : i32, i32
  }
  func.func @transform_2(%arg0: i32) -> (i32, i32) {
    %c0_i32 = arith.constant 0 : i32
    %c0_i32_0 = arith.constant 0 : i32
    %c0_i32_1 = arith.constant 0 : i32
    return %c0_i32, %c0_i32_0 : i32, i32
  }
  func.func @transform_3(%arg0: i32) -> (i32, i32) {
    %c0_i32 = arith.constant 0 : i32
    %c0_i32_0 = arith.constant 0 : i32
    return %arg0, %c0_i32 : i32, i32
  }
}

</mosaic_0001>

<llo_original>
// kernel: linear_encoder_forward.1
$region0: #{linear_encoder_forward.1}
  #allocation0 [shape = 'u32[]', space=smem, size = 0x4, offset = 0x4, fixed_abs, tag = 'smem constant byte address 0x4 - core index']
  #allocation1 [shape = 'u32[144,128]{1,0:T(1,128)}', space=vmem, size = 0x12000, scoped, tag = 'internal scratch']
  %s0 = inlined_call_operand.vmem [shape: f32[8,2], index: 0, kind: input, shape index: {}]
  %s1 = inlined_call_operand.vmem [shape: f32[2,128], index: 1, kind: input, shape index: {}]
  %s2 = inlined_call_operand.vmem [shape: f32[1,128], index: 2, kind: input, shape index: {}]
  %s3 = inlined_call_operand.hbm [shape: f32[8,128], index: 3, kind: output, shape index: {}]
  %s4 = sld [smem:[#allocation0]]
  $region22: #{linear_encoder_forward.1} parent=0
    _
  %s6 = ssub.s32 1, %s4
  %s7 = scalar_select 0, %s6, %s4
  $region1: #{linear_encoder_forward.1} parent=0
    #allocation2 [shape = 'u8[4096]{0}', space=vmem, size = 0x1000, scoped, tag = 'output window, operand 0, single buffered']
    #allocation3 [shape = 's32[1]{0}', space=sflag, size = 0x4, scoped, tag = 'scoped memory for linear_encoder_forward.1']
    %8 = vsyncpa [#allocation3], 0
    // Predicated region
    $region2: #{linear_encoder_forward.1} parent=1 // pred_check
      _
    $region3: #{linear_encoder_forward.1} parent=1 // pred_check_branch
      %10 = sbr.rel (0) target = $region5
    $region4: #{linear_encoder_forward.1} parent=1 // pred_region
      _
    $region5: #{linear_encoder_forward.1} parent=1 // pred_fallthru
      _
    // Predicated region
    $region6: #{linear_encoder_forward.1} parent=1 // pred_check
      _
    $region7: #{linear_encoder_forward.1} parent=1 // pred_check_branch
      %12 = sbr.rel (0) target = $region9
    $region8: #{linear_encoder_forward.1} parent=1 // pred_region
      _
    $region9: #{linear_encoder_forward.1} parent=1 // pred_fallthru
      _
    // Predicated region
    $region10: #{linear_encoder_forward.1} parent=1 // pred_check
      _
    $region11: #{linear_encoder_forward.1} parent=1 // pred_check_branch
      %14 = sbr.rel (0) target = $region13
    $region12: #{linear_encoder_forward.1} parent=1 // pred_region
      _
    $region13: #{linear_encoder_forward.1} parent=1 // pred_fallthru
      _
    %v15 = vld [vmem:[%s0] sm:$0xff]
    %v16 = vld [vmem:[%s1] sm:$0x3]
    %18 = vset.pattern.permute.xlu0 0
    %19 = vperm.xlu0 %18, %v15
    %v20 = vpop.permute.xlu0 %19
    %v22 = vlaneseq
    %v23 = vshrl.u32 %v22, 7
    %v24 = vsub.s32 0, %v23
    %v25 = vrot.slane %v16, %v24
    %v26 = vmul.f32 %v20, %v25
    %27 = vset.pattern.permute.xlu0 1
    %28 = vperm.xlu0 %27, %v15
    %v29 = vpop.permute.xlu0 %28
    %v31 = vlaneseq
    %v32 = vshrl.u32 %v31, 7
    %v33 = vsub.s32 1, %v32
    %v34 = vrot.slane %v16, %v33
    %v35 = vmul.f32 %v29, %v34
    %v36 = vadd.f32 %v26, %v35
    %v37 = vld [vmem:[%s2] sm:$0x1]
    %v39 = vlaneseq
    %v40 = vshrl.u32 %v39, 7
    %v41 = vsub.s32 0, %v40
    %v42 = vrot.slane %v37, %v41
    %v44 = vadd.f32 %v36, %v42
    %45 = vst [vmem:[#allocation2] sm:$0xff] %v44
    // Predicated region
    $region14: #{linear_encoder_forward.1} parent=1 // pred_check
      _
    $region15: #{linear_encoder_forward.1} parent=1 // pred_check_branch
      %47 = sbr.rel (0) target = $region17
    $region16: #{linear_encoder_forward.1} parent=1 // pred_region
      %s49 = ssub.s32 128, 128
      %50 = vsyncadd [#allocation3], %s49
      %s52 = sshll.u32 [#allocation2], 4
      %s53 = int_to_ptr.vmem [resolvable:$true] %s52
      %55 = dma.vmem_to_hbm [thread:$0]  %s53, 128, %s3, [#allocation3]
    $region17: #{linear_encoder_forward.1} parent=1 // pred_fallthru
      _
    // Predicated region
    $region18: #{linear_encoder_forward.1} parent=1 // pred_check
      _
    $region19: #{linear_encoder_forward.1} parent=1 // pred_check_branch
      %57 = sbr.rel (0) target = $region21
    $region20: #{linear_encoder_forward.1} parent=1 // pred_region
      %58 = dma.done [#allocation3], 128
    $region21: #{linear_encoder_forward.1} parent=1 // pred_fallthru
      _
    %59 = vsyncpa [#allocation3], 1

</llo_original>
